<compile_context>
chip_gen: v5e
topology: v5e:2x2
jax: 0.10.0
libtpu: 0.0.40
codegen_flags: <defaults>
</compile_context>

<pallas_src>
import functools

import jax
import jax.numpy as jnp
from jax.experimental import pallas as pl
from jax.experimental.pallas import tpu as pltpu


def _round_up(v, m):
    return (v + m - 1) // m * m


def _make_kernel(pre_lnorm: bool, eps: float):
    """Fused: [pre-LN] -> (Linear1 ∘ LSTM in-proj per gate) -> gates -> ReLU -> Linear2 -> residual/LN."""

    def kernel(x_ref, wi_ref, wg_ref, wo_ref, bi_ref, bg_ref, bo_ref,
               w2_ref, b2_ref, gamma_ref, beta_ref, out_ref):
        x = x_ref[...].astype(jnp.float32)                  # (TB, D) residual kept in f32
        gamma = gamma_ref[...]
        beta = beta_ref[...]

        def layer_norm(v):
            mu = jnp.mean(v, axis=-1, keepdims=True)
            var = jnp.mean((v - mu) ** 2, axis=-1, keepdims=True)
            return (v - mu) * jax.lax.rsqrt(var + eps) * gamma + beta

        inp = layer_norm(x) if pre_lnorm else x
        inp_mm = inp.astype(wi_ref.dtype)                   # bf16 (or f32) MXU operand

        # Per-gate fused projection (forget gate dropped since c0 == 0). Three separate matmuls
        # keep each gate a lane-aligned contiguous slab; accumulation in f32 on the MXU.
        gi = jnp.dot(inp_mm, wi_ref[...], preferred_element_type=jnp.float32) + bi_ref[...]
        gg = jnp.dot(inp_mm, wg_ref[...], preferred_element_type=jnp.float32) + bg_ref[...]
        go = jnp.dot(inp_mm, wo_ref[...], preferred_element_type=jnp.float32) + bo_ref[...]

        # LSTMCell with h0 = c0 = 0 (gate math stays in f32 on the VPU/EUP path).
        c = jax.nn.sigmoid(gi) * jnp.tanh(gg)
        h = jax.nn.sigmoid(go) * jnp.tanh(c)
        h = jnp.maximum(h, 0.0)                             # ReLU (+ Dropout == identity in eval)

        # Linear(d_inner, d_model) (+ Dropout == identity in eval)
        core = jnp.dot(h.astype(w2_ref.dtype), w2_ref[...],
                       preferred_element_type=jnp.float32) + b2_ref[...]

        out = core + x if pre_lnorm else layer_norm(x + core)
        out_ref[...] = out.astype(out_ref.dtype)

    return kernel


def positionwise_lstm_ff(x, params, *, pre_lnorm=False, eps=1e-5,
                         block_b=256, matmul_dtype=jnp.bfloat16):
    """x: (B, d_model) float32. params: dict of PyTorch-convention weights."""
    B, d_model = x.shape
    d_inner = params["b1"].shape[0]
    assert d_inner == d_model, "original module only type-checks when d_inner == d_model"
    f32 = jnp.float32

    # --- Algebraic fusion of Linear1 into the LSTM input projection (once, in f32) ---
    w1_t = params["w1"].astype(f32).T                       # (d_model, d_inner)
    wih_t = params["w_ih"].astype(f32).T                    # (d_model, 4*d_inner)  [d_inner == d_model]
    w_fused = w1_t @ wih_t                                  # (d_model, 4*d_inner)
    b_fused = params["b1"].astype(f32) @ wih_t + params["b_ih"] + params["b_hh"]

    d = d_inner
    # PyTorch LSTMCell gate order: i, f, g, o. Forget gate is dead (c0 == 0) -> dropped.
    w_i = w_fused[:, 0 * d:1 * d].astype(matmul_dtype)
    w_g = w_fused[:, 2 * d:3 * d].astype(matmul_dtype)
    w_o = w_fused[:, 3 * d:4 * d].astype(matmul_dtype)
    b_i = b_fused[0 * d:1 * d].reshape(1, d).astype(f32)
    b_g = b_fused[2 * d:3 * d].reshape(1, d).astype(f32)
    b_o = b_fused[3 * d:4 * d].reshape(1, d).astype(f32)

    w2_t = params["w2"].astype(f32).T.astype(matmul_dtype)  # (d_inner, d_model)
    b2 = params["b2"].reshape(1, -1).astype(f32)
    gamma = params["gamma"].reshape(1, -1).astype(f32)
    beta = params["beta"].reshape(1, -1).astype(f32)

    # --- Batch tiling: 1-D grid over B (pipelined x/out DMAs, "parallel" for megacore) ---
    tb = min(block_b, _round_up(B, 8))
    Bp = _round_up(B, tb)
    xp = x if Bp == B else jnp.pad(x, ((0, Bp - B), (0, 0)))
    grid = (Bp // tb,)

    batch_map = lambda i: (i, 0)
    const_map = lambda i: (0, 0)        # weights/biases fetched once, resident across grid steps

    weight_args = (w_i, w_g, w_o, b_i, b_g, b_o, w2_t, b2, gamma, beta)
    in_specs = [pl.BlockSpec((tb, d_model), batch_map)] + [
        pl.BlockSpec(a.shape, const_map) for a in weight_args
    ]
    out_spec = pl.BlockSpec((tb, d_model), batch_map)

    # --- VMEM budget: resident weights + double-buffered x/out tiles + f32 temporaries ---
    def nbytes(a):
        return a.size * a.dtype.itemsize

    est = (sum(nbytes(a) for a in weight_args)
           + 2 * 2 * tb * d_model * x.dtype.itemsize         # x + out, double-buffered
           + 16 * tb * max(d_model, d_inner) * 4)             # in-kernel f32 intermediates
    # TODO(synk): for very large d_model on v7x (64 MiB VMEM) tile the gate dimension instead.
    vmem_limit = int(min(max(est, 16 << 20), 64 << 20))

    out = pl.pallas_call(
        _make_kernel(pre_lnorm, eps),
        out_shape=jax.ShapeDtypeStruct((Bp, d_model), x.dtype),
        grid=grid,
        in_specs=in_specs,
        out_specs=out_spec,
        compiler_params=pltpu.CompilerParams(
            dimension_semantics=("parallel",),
            vmem_limit_bytes=vmem_limit),
    )(xp, *weight_args)
    return out[:B]


def _reference(x, params, *, pre_lnorm=False, eps=1e-5):
    """Pure-JAX reference mirroring the PyTorch forward (eval mode, h0=c0=0), unfused."""

    def ln(v):
        mu = jnp.mean(v, -1, keepdims=True)
        var = jnp.mean((v - mu) ** 2, -1, keepdims=True)
        return (v - mu) / jnp.sqrt(var + eps) * params["gamma"] + params["beta"]

    inp = ln(x) if pre_lnorm else x
    z = inp @ params["w1"].T + params["b1"]
    gates = z @ params["w_ih"].T + params["b_ih"] + params["b_hh"]
    i, f, g, o = jnp.split(gates, 4, axis=-1)
    c = jax.nn.sigmoid(i) * jnp.tanh(g)
    h = jax.nn.sigmoid(o) * jnp.tanh(c)
    h = jnp.maximum(h, 0.0)
    core = h @ params["w2"].T + params["b2"]
    return core + x if pre_lnorm else ln(x + core)


def _init_params(key, d_model, d_inner):
    """Deterministic PyTorch-style uniform init for all parameters."""
    ks = jax.random.split(key, 8)
    u = lambda k, shape, bound: jax.random.uniform(k, shape, jnp.float32, -bound, bound)
    lim1 = 1.0 / jnp.sqrt(d_model)
    limL = 1.0 / jnp.sqrt(d_inner)
    return {
        "w1": u(ks[0], (d_inner, d_model), lim1),
        "b1": u(ks[1], (d_inner,), lim1),
        "w_ih": u(ks[2], (4 * d_inner, d_model), limL),
        "b_ih": u(ks[3], (4 * d_inner,), limL),
        "b_hh": u(ks[4], (4 * d_inner,), limL),
        "w2": u(ks[5], (d_model, d_inner), limL),
        "b2": u(ks[6], (d_model,), limL),
        "gamma": jnp.ones((d_model,), jnp.float32),
        "beta": jnp.zeros((d_model,), jnp.float32),
    }


if __name__ == "__main__":
    B, d_model, d_inner = 8, 32, 32   # d_inner == d_model (required by the original Sequential)
    key = jax.random.PRNGKey(0)
    kx, kp = jax.random.split(key)
    x = jax.random.normal(kx, (B, d_model), jnp.float32)
    params = _init_params(kp, d_model, d_inner)

    for pre_lnorm in (False, True):
        ref = _reference(x, params, pre_lnorm=pre_lnorm)

        # Exact path (f32 MXU operands): tight tolerance.
        run_f32 = jax.jit(functools.partial(
            positionwise_lstm_ff, pre_lnorm=pre_lnorm, matmul_dtype=jnp.float32))
        out_f32 = jax.block_until_ready(run_f32(x, params))
        assert out_f32.shape == (B, d_model) and out_f32.dtype == jnp.float32
        assert jnp.allclose(out_f32, ref, atol=1e-4, rtol=1e-4), "f32 kernel mismatch vs reference"

        # Performance path (bf16 MXU operands, f32 accumulation/elementwise): looser tolerance.
        run_bf16 = jax.jit(functools.partial(
            positionwise_lstm_ff, pre_lnorm=pre_lnorm, matmul_dtype=jnp.bfloat16))
        out_bf16 = jax.block_until_ready(run_bf16(x, params))
        assert jnp.allclose(out_bf16, ref, atol=5e-2, rtol=5e-2), "bf16 kernel mismatch vs reference"

    print("KERNEL_OK")
</pallas_src>

<mosaic_0001>
module attributes {stable_mosaic.version = 11 : i64} {
  func.func @kernel(%arg0: i32, %arg1: memref<8x32xf32, #tpu.memory_space<vmem>>, %arg2: memref<32x32xf32, #tpu.memory_space<vmem>>, %arg3: memref<32x32xf32, #tpu.memory_space<vmem>>, %arg4: memref<32x32xf32, #tpu.memory_space<vmem>>, %arg5: memref<1x32xf32, #tpu.memory_space<vmem>>, %arg6: memref<1x32xf32, #tpu.memory_space<vmem>>, %arg7: memref<1x32xf32, #tpu.memory_space<vmem>>, %arg8: memref<32x32xf32, #tpu.memory_space<vmem>>, %arg9: memref<1x32xf32, #tpu.memory_space<vmem>>, %arg10: memref<1x32xf32, #tpu.memory_space<vmem>>, %arg11: memref<1x32xf32, #tpu.memory_space<vmem>>, %arg12: memref<8x32xf32, #tpu.memory_space<vmem>>) attributes {dimension_semantics = [#tpu.dimension_semantics<parallel>], iteration_bounds = array<i64: 1>, scalar_prefetch = 0 : i64, scratch_operands = 0 : i64, tpu.core_type = #tpu.core_type<tc>, window_params = [{transform_indices = @transform_0, window_bounds = array<i64: 8, 32>}, {pipeline_mode = #tpu.pipeline_mode<synchronous>, transform_indices = @transform_1, window_bounds = array<i64: 32, 32>}, {pipeline_mode = #tpu.pipeline_mode<synchronous>, transform_indices = @transform_2, window_bounds = array<i64: 32, 32>}, {pipeline_mode = #tpu.pipeline_mode<synchronous>, transform_indices = @transform_3, window_bounds = array<i64: 32, 32>}, {pipeline_mode = #tpu.pipeline_mode<synchronous>, transform_indices = @transform_4, window_bounds = array<i64: 1, 32>}, {pipeline_mode = #tpu.pipeline_mode<synchronous>, transform_indices = @transform_5, window_bounds = array<i64: 1, 32>}, {pipeline_mode = #tpu.pipeline_mode<synchronous>, transform_indices = @transform_6, window_bounds = array<i64: 1, 32>}, {pipeline_mode = #tpu.pipeline_mode<synchronous>, transform_indices = @transform_7, window_bounds = array<i64: 32, 32>}, {pipeline_mode = #tpu.pipeline_mode<synchronous>, transform_indices = @transform_8, window_bounds = array<i64: 1, 32>}, {pipeline_mode = #tpu.pipeline_mode<synchronous>, transform_indices = @transform_9, window_bounds = array<i64: 1, 32>}, {pipeline_mode = #tpu.pipeline_mode<synchronous>, transform_indices = @transform_10, window_bounds = array<i64: 1, 32>}, {transform_indices = @transform_11, window_bounds = array<i64: 8, 32>}]} {
    %c0 = arith.constant 0 : index
    %c0_0 = arith.constant 0 : index
    %0 = vector.load %arg1[%c0, %c0_0] : memref<8x32xf32, #tpu.memory_space<vmem>>, vector<8x32xf32>
    %c0_1 = arith.constant 0 : index
    %c0_2 = arith.constant 0 : index
    %1 = vector.load %arg10[%c0_1, %c0_2] : memref<1x32xf32, #tpu.memory_space<vmem>>, vector<1x32xf32>
    %c0_3 = arith.constant 0 : index
    %c0_4 = arith.constant 0 : index
    %2 = vector.load %arg11[%c0_3, %c0_4] : memref<1x32xf32, #tpu.memory_space<vmem>>, vector<1x32xf32>
    %c0_5 = arith.constant 0 : index
    %c0_6 = arith.constant 0 : index
    %3 = vector.load %arg2[%c0_5, %c0_6] : memref<32x32xf32, #tpu.memory_space<vmem>>, vector<32x32xf32>
    %cst = arith.constant dense<0.000000e+00> : vector<8x32xf32>
    %4 = tpu.matmul %0, %3, %cst {dimension_numbers = #tpu.dot_dimension_numbers<[1], [0], [0], [1], [0, 0, 1, 1], [], []>} : vector<8x32xf32>, vector<32x32xf32>, vector<8x32xf32> -> vector<8x32xf32>
    %c0_7 = arith.constant 0 : index
    %c0_8 = arith.constant 0 : index
    %5 = vector.load %arg5[%c0_7, %c0_8] : memref<1x32xf32, #tpu.memory_space<vmem>>, vector<1x32xf32>
    %6 = vector.broadcast %5 : vector<1x32xf32> to vector<8x32xf32>
    %7 = arith.addf %4, %6 : vector<8x32xf32>
    %c0_9 = arith.constant 0 : index
    %c0_10 = arith.constant 0 : index
    %8 = vector.load %arg3[%c0_9, %c0_10] : memref<32x32xf32, #tpu.memory_space<vmem>>, vector<32x32xf32>
    %cst_11 = arith.constant dense<0.000000e+00> : vector<8x32xf32>
    %9 = tpu.matmul %0, %8, %cst_11 {dimension_numbers = #tpu.dot_dimension_numbers<[1], [0], [0], [1], [0, 0, 1, 1], [], []>} : vector<8x32xf32>, vector<32x32xf32>, vector<8x32xf32> -> vector<8x32xf32>
    %c0_12 = arith.constant 0 : index
    %c0_13 = arith.constant 0 : index
    %10 = vector.load %arg6[%c0_12, %c0_13] : memref<1x32xf32, #tpu.memory_space<vmem>>, vector<1x32xf32>
    %11 = vector.broadcast %10 : vector<1x32xf32> to vector<8x32xf32>
    %12 = arith.addf %9, %11 : vector<8x32xf32>
    %c0_14 = arith.constant 0 : index
    %c0_15 = arith.constant 0 : index
    %13 = vector.load %arg4[%c0_14, %c0_15] : memref<32x32xf32, #tpu.memory_space<vmem>>, vector<32x32xf32>
    %cst_16 = arith.constant dense<0.000000e+00> : vector<8x32xf32>
    %14 = tpu.matmul %0, %13, %cst_16 {dimension_numbers = #tpu.dot_dimension_numbers<[1], [0], [0], [1], [0, 0, 1, 1], [], []>} : vector<8x32xf32>, vector<32x32xf32>, vector<8x32xf32> -> vector<8x32xf32>
    %c0_17 = arith.constant 0 : index
    %c0_18 = arith.constant 0 : index
    %15 = vector.load %arg7[%c0_17, %c0_18] : memref<1x32xf32, #tpu.memory_space<vmem>>, vector<1x32xf32>
    %16 = vector.broadcast %15 : vector<1x32xf32> to vector<8x32xf32>
    %17 = arith.addf %14, %16 : vector<8x32xf32>
    %18 = arith.negf %7 : vector<8x32xf32>
    %19 = math.exp %18 : vector<8x32xf32>
    %cst_19 = arith.constant 1.000000e+00 : f32
    %20 = vector.broadcast %cst_19 : f32 to vector<8x32xf32>
    %21 = arith.addf %20, %19 : vector<8x32xf32>
    %22 = arith.divf %20, %21 : vector<8x32xf32>
    %23 = math.tanh %12 : vector<8x32xf32>
    %24 = arith.mulf %22, %23 : vector<8x32xf32>
    %25 = arith.negf %17 : vector<8x32xf32>
    %26 = math.exp %25 : vector<8x32xf32>
    %cst_20 = arith.constant 1.000000e+00 : f32
    %27 = vector.broadcast %cst_20 : f32 to vector<8x32xf32>
    %28 = arith.addf %27, %26 : vector<8x32xf32>
    %29 = arith.divf %27, %28 : vector<8x32xf32>
    %30 = math.tanh %24 : vector<8x32xf32>
    %31 = arith.mulf %29, %30 : vector<8x32xf32>
    %cst_21 = arith.constant 0.000000e+00 : f32
    %32 = vector.broadcast %cst_21 : f32 to vector<8x32xf32>
    %33 = arith.maximumf %31, %32 : vector<8x32xf32>
    %c0_22 = arith.constant 0 : index
    %c0_23 = arith.constant 0 : index
    %34 = vector.load %arg8[%c0_22, %c0_23] : memref<32x32xf32, #tpu.memory_space<vmem>>, vector<32x32xf32>
    %cst_24 = arith.constant dense<0.000000e+00> : vector<8x32xf32>
    %35 = tpu.matmul %33, %34, %cst_24 {dimension_numbers = #tpu.dot_dimension_numbers<[1], [0], [0], [1], [0, 0, 1, 1], [], []>} : vector<8x32xf32>, vector<32x32xf32>, vector<8x32xf32> -> vector<8x32xf32>
    %c0_25 = arith.constant 0 : index
    %c0_26 = arith.constant 0 : index
    %36 = vector.load %arg9[%c0_25, %c0_26] : memref<1x32xf32, #tpu.memory_space<vmem>>, vector<1x32xf32>
    %37 = vector.broadcast %36 : vector<1x32xf32> to vector<8x32xf32>
    %38 = arith.addf %35, %37 : vector<8x32xf32>
    %39 = arith.addf %0, %38 : vector<8x32xf32>
    %cst_27 = arith.constant dense<0.000000e+00> : vector<8xf32>
    %40 = vector.multi_reduction <add>, %39, %cst_27 [1] : vector<8x32xf32> to vector<8xf32>
    %41 = vector.shape_cast %40 : vector<8xf32> to vector<8x1xf32>
    %cst_28 = arith.constant 3.200000e+01 : f32
    %42 = vector.broadcast %cst_28 : f32 to vector<8x1xf32>
    %43 = arith.divf %41, %42 : vector<8x1xf32>
    %44 = vector.broadcast %43 : vector<8x1xf32> to vector<8x32xf32>
    %45 = arith.subf %39, %44 : vector<8x32xf32>
    %46 = arith.mulf %45, %45 : vector<8x32xf32>
    %cst_29 = arith.constant dense<0.000000e+00> : vector<8xf32>
    %47 = vector.multi_reduction <add>, %46, %cst_29 [1] : vector<8x32xf32> to vector<8xf32>
    %48 = vector.shape_cast %47 : vector<8xf32> to vector<8x1xf32>
    %cst_30 = arith.constant 3.200000e+01 : f32
    %49 = vector.broadcast %cst_30 : f32 to vector<8x1xf32>
    %50 = arith.divf %48, %49 : vector<8x1xf32>
    %51 = vector.broadcast %43 : vector<8x1xf32> to vector<8x32xf32>
    %52 = arith.subf %39, %51 : vector<8x32xf32>
    %cst_31 = arith.constant 9.99999974E-6 : f32
    %53 = vector.broadcast %cst_31 : f32 to vector<8x1xf32>
    %54 = arith.addf %50, %53 : vector<8x1xf32>
    %55 = math.rsqrt %54 : vector<8x1xf32>
    %56 = vector.broadcast %55 : vector<8x1xf32> to vector<8x32xf32>
    %57 = arith.mulf %52, %56 : vector<8x32xf32>
    %58 = vector.broadcast %1 : vector<1x32xf32> to vector<8x32xf32>
    %59 = arith.mulf %57, %58 : vector<8x32xf32>
    %60 = vector.broadcast %2 : vector<1x32xf32> to vector<8x32xf32>
    %61 = arith.addf %59, %60 : vector<8x32xf32>
    %c0_32 = arith.constant 0 : index
    %c0_33 = arith.constant 0 : index
    %62 = vector.load %arg12[%c0_32, %c0_33] : memref<8x32xf32, #tpu.memory_space<vmem>>, vector<8x32xf32>
    tpu.vector_store %arg12[%c0_32, %c0_33], %61 {strides = array<i32>} : memref<8x32xf32, #tpu.memory_space<vmem>>, vector<8x32xf32>,
    return
  }
  func.func @transform_0(%arg0: i32) -> (i32, i32) {
    %c0_i32 = arith.constant 0 : i32
    %c0_i32_0 = arith.constant 0 : i32
    return %arg0, %c0_i32 : i32, i32
  }
  func.func @transform_1(%arg0: i32) -> (i32, i32) {
    %c0_i32 = arith.constant 0 : i32
    %c0_i32_0 = arith.constant 0 : i32
    %c0_i32_1 = arith.constant 0 : i32
    return %c0_i32, %c0_i32_0 : i32, i32
  }
  func.func @transform_2(%arg0: i32) -> (i32, i32) {
    %c0_i32 = arith.constant 0 : i32
    %c0_i32_0 = arith.constant 0 : i32
    %c0_i32_1 = arith.constant 0 : i32
    return %c0_i32, %c0_i32_0 : i32, i32
  }
  func.func @transform_3(%arg0: i32) -> (i32, i32) {
    %c0_i32 = arith.constant 0 : i32
    %c0_i32_0 = arith.constant 0 : i32
    %c0_i32_1 = arith.constant 0 : i32
    return %c0_i32, %c0_i32_0 : i32, i32
  }
  func.func @transform_4(%arg0: i32) -> (i32, i32) {
    %c0_i32 = arith.constant 0 : i32
    %c0_i32_0 = arith.constant 0 : i32
    %c0_i32_1 = arith.constant 0 : i32
    return %c0_i32, %c0_i32_0 : i32, i32
  }
  func.func @transform_5(%arg0: i32) -> (i32, i32) {
    %c0_i32 = arith.constant 0 : i32
    %c0_i32_0 = arith.constant 0 : i32
    %c0_i32_1 = arith.constant 0 : i32
    return %c0_i32, %c0_i32_0 : i32, i32
  }
  func.func @transform_6(%arg0: i32) -> (i32, i32) {
    %c0_i32 = arith.constant 0 : i32
    %c0_i32_0 = arith.constant 0 : i32
    %c0_i32_1 = arith.constant 0 : i32
    return %c0_i32, %c0_i32_0 : i32, i32
  }
  func.func @transform_7(%arg0: i32) -> (i32, i32) {
    %c0_i32 = arith.constant 0 : i32
    %c0_i32_0 = arith.constant 0 : i32
    %c0_i32_1 = arith.constant 0 : i32
    return %c0_i32, %c0_i32_0 : i32, i32
  }
  func.func @transform_8(%arg0: i32) -> (i32, i32) {
    %c0_i32 = arith.constant 0 : i32
    %c0_i32_0 = arith.constant 0 : i32
    %c0_i32_1 = arith.constant 0 : i32
    return %c0_i32, %c0_i32_0 : i32, i32
  }
  func.func @transform_9(%arg0: i32) -> (i32, i32) {
    %c0_i32 = arith.constant 0 : i32
    %c0_i32_0 = arith.constant 0 : i32
    %c0_i32_1 = arith.constant 0 : i32
    return %c0_i32, %c0_i32_0 : i32, i32
  }
  func.func @transform_10(%arg0: i32) -> (i32, i32) {
    %c0_i32 = arith.constant 0 : i32
    %c0_i32_0 = arith.constant 0 : i32
    %c0_i32_1 = arith.constant 0 : i32
    return %c0_i32, %c0_i32_0 : i32, i32
  }
  func.func @transform_11(%arg0: i32) -> (i32, i32) {
    %c0_i32 = arith.constant 0 : i32
    %c0_i32_0 = arith.constant 0 : i32
    return %arg0, %c0_i32 : i32, i32
  }
}

</mosaic_0001>

<llo_original>
// kernel: positionwise_lstm_ff.1
$region0: #{positionwise_lstm_ff.1}
  #allocation0 [shape = 'u32[]', space=smem, size = 0x4, offset = 0x4, fixed_abs, tag = 'smem constant byte address 0x4 - core index']
  #allocation1 [shape = 'u32[72,128]{1,0:T(1,128)}', space=vmem, size = 0x9000, scoped, tag = 'internal scratch']
  %s0 = inlined_call_operand.vmem [shape: f32[8,32], index: 0, kind: input, shape index: {}]
  %s1 = inlined_call_operand.vmem [shape: f32[32,32], index: 1, kind: input, shape index: {}]
  %s2 = inlined_call_operand.vmem [shape: f32[32,32], index: 2, kind: input, shape index: {}]
  %s3 = inlined_call_operand.vmem [shape: f32[32,32], index: 3, kind: input, shape index: {}]
  %s4 = inlined_call_operand.vmem [shape: f32[1,32], index: 4, kind: input, shape index: {}]
  %s5 = inlined_call_operand.vmem [shape: f32[1,32], index: 5, kind: input, shape index: {}]
  %s6 = inlined_call_operand.vmem [shape: f32[1,32], index: 6, kind: input, shape index: {}]
  %s7 = inlined_call_operand.vmem [shape: f32[32,32], index: 7, kind: input, shape index: {}]
  %s8 = inlined_call_operand.vmem [shape: f32[1,32], index: 8, kind: input, shape index: {}]
  %s9 = inlined_call_operand.vmem [shape: f32[1,32], index: 9, kind: input, shape index: {}]
  %s10 = inlined_call_operand.vmem [shape: f32[1,32], index: 10, kind: input, shape index: {}]
  %s11 = inlined_call_operand.hbm [shape: f32[8,32], index: 11, kind: output, shape index: {}]
  %s12 = sld [smem:[#allocation0]]
  $region54: #{positionwise_lstm_ff.1} parent=0
    _
  %s14 = ssub.s32 1, %s12
  %s15 = scalar_select 0, %s14, %s12
  $region1: #{positionwise_lstm_ff.1} parent=0
    #allocation2 [shape = 'u8[4096]{0}', space=vmem, size = 0x1000, scoped, tag = 'output window, operand 0, single buffered']
    #allocation3 [shape = 's32[1]{0}', space=sflag, size = 0x4, scoped, tag = 'scoped memory for positionwise_lstm_ff.1']
    %16 = vsyncpa [#allocation3], 0
    // Predicated region
    $region2: #{positionwise_lstm_ff.1} parent=1 // pred_check
      _
    $region3: #{positionwise_lstm_ff.1} parent=1 // pred_check_branch
      %18 = sbr.rel (0) target = $region5
    $region4: #{positionwise_lstm_ff.1} parent=1 // pred_region
      _
    $region5: #{positionwise_lstm_ff.1} parent=1 // pred_fallthru
      _
    // Predicated region
    $region6: #{positionwise_lstm_ff.1} parent=1 // pred_check
      _
    $region7: #{positionwise_lstm_ff.1} parent=1 // pred_check_branch
      %20 = sbr.rel (0) target = $region9
    $region8: #{positionwise_lstm_ff.1} parent=1 // pred_region
      _
    $region9: #{positionwise_lstm_ff.1} parent=1 // pred_fallthru
      _
    // Predicated region
    $region10: #{positionwise_lstm_ff.1} parent=1 // pred_check
      _
    $region11: #{positionwise_lstm_ff.1} parent=1 // pred_check_branch
      %22 = sbr.rel (0) target = $region13
    $region12: #{positionwise_lstm_ff.1} parent=1 // pred_region
      _
    $region13: #{positionwise_lstm_ff.1} parent=1 // pred_fallthru
      _
    // Predicated region
    $region14: #{positionwise_lstm_ff.1} parent=1 // pred_check
      _
    $region15: #{positionwise_lstm_ff.1} parent=1 // pred_check_branch
      %24 = sbr.rel (0) target = $region17
    $region16: #{positionwise_lstm_ff.1} parent=1 // pred_region
      _
    $region17: #{positionwise_lstm_ff.1} parent=1 // pred_fallthru
      _
    // Predicated region
    $region18: #{positionwise_lstm_ff.1} parent=1 // pred_check
      _
    $region19: #{positionwise_lstm_ff.1} parent=1 // pred_check_branch
      %26 = sbr.rel (0) target = $region21
    $region20: #{positionwise_lstm_ff.1} parent=1 // pred_region
      _
    $region21: #{positionwise_lstm_ff.1} parent=1 // pred_fallthru
      _
    // Predicated region
    $region22: #{positionwise_lstm_ff.1} parent=1 // pred_check
      _
    $region23: #{positionwise_lstm_ff.1} parent=1 // pred_check_branch
      %28 = sbr.rel (0) target = $region25
    $region24: #{positionwise_lstm_ff.1} parent=1 // pred_region
      _
    $region25: #{positionwise_lstm_ff.1} parent=1 // pred_fallthru
      _
    // Predicated region
    $region26: #{positionwise_lstm_ff.1} parent=1 // pred_check
      _
    $region27: #{positionwise_lstm_ff.1} parent=1 // pred_check_branch
      %30 = sbr.rel (0) target = $region29
    $region28: #{positionwise_lstm_ff.1} parent=1 // pred_region
      _
    $region29: #{positionwise_lstm_ff.1} parent=1 // pred_fallthru
      _
    // Predicated region
    $region30: #{positionwise_lstm_ff.1} parent=1 // pred_check
      _
    $region31: #{positionwise_lstm_ff.1} parent=1 // pred_check_branch
      %32 = sbr.rel (0) target = $region33
    $region32: #{positionwise_lstm_ff.1} parent=1 // pred_region
      _
    $region33: #{positionwise_lstm_ff.1} parent=1 // pred_fallthru
      _
    // Predicated region
    $region34: #{positionwise_lstm_ff.1} parent=1 // pred_check
      _
    $region35: #{positionwise_lstm_ff.1} parent=1 // pred_check_branch
      %34 = sbr.rel (0) target = $region37
    $region36: #{positionwise_lstm_ff.1} parent=1 // pred_region
      _
    $region37: #{positionwise_lstm_ff.1} parent=1 // pred_fallthru
      _
    // Predicated region
    $region38: #{positionwise_lstm_ff.1} parent=1 // pred_check
      _
    $region39: #{positionwise_lstm_ff.1} parent=1 // pred_check_branch
      %36 = sbr.rel (0) target = $region41
    $region40: #{positionwise_lstm_ff.1} parent=1 // pred_region
      _
    $region41: #{positionwise_lstm_ff.1} parent=1 // pred_fallthru
      _
    // Predicated region
    $region42: #{positionwise_lstm_ff.1} parent=1 // pred_check
      _
    $region43: #{positionwise_lstm_ff.1} parent=1 // pred_check_branch
      %38 = sbr.rel (0) target = $region45
    $region44: #{positionwise_lstm_ff.1} parent=1 // pred_region
      _
    $region45: #{positionwise_lstm_ff.1} parent=1 // pred_fallthru
      _
    %v39 = vld [vmem:[%s0] sm:$0xff]
    %v40 = vld [vmem:[%s9] sm:$0x1]
    %v41 = vld [vmem:[%s10] sm:$0x1]
    %v42 = vld [vmem:[%s1] sm:$0xff]
    %v43 = vld [vmem:[%s1 + $0x8] sm:$0xff]
    %v44 = vld [vmem:[%s1 + $0x10] sm:$0xff]
    %v45 = vld [vmem:[%s1 + $0x18] sm:$0xff]
    %v46 = vld [vmem:[%s4] sm:$0x1]
    %v48 = vperm.slane %v46, 0
    %vm50 = vcmask 261120
    %v52 = vsel %vm50, %v39, 0
    %54 = vmatpush.msra.mxu0 0.0
    %55 = vmatpush.msra.mxu0 0.0
    %56 = vmatpush.msra.mxu0 0.0
    %57 = vmatpush.msra.mxu0 0.0
    %58 = vmatpush.msra.mxu0 0.0
    %59 = vmatpush.msra.mxu0 0.0
    %60 = vmatpush.msra.mxu0 0.0
    %61 = vmatpush.msra.mxu0 0.0
    %62 = vmatpush.msra.mxu0 0.0
    %63 = vmatpush.msra.mxu0 0.0
    %64 = vmatpush.msra.mxu0 0.0
    %65 = vmatpush.msra.mxu0 0.0
    %66 = vmatpush.msra.mxu0 %v45
    %67 = vmatpush.msra.mxu0 %v44
    %68 = vmatpush.msra.mxu0 %v43
    %69 = vmatpush.msra.mxu0 %v42
    %70 = vmatmul.f32.gmra.mxu0 %v52
    %v71 = vpop.f32.mrf.mxu0
    %v72 = vadd.f32 %v48, %v71
    %73 = vdwg.mxu0
    %v74 = vld [vmem:[%s2] sm:$0xff]
    %v75 = vld [vmem:[%s2 + $0x8] sm:$0xff]
    %v76 = vld [vmem:[%s2 + $0x10] sm:$0xff]
    %v77 = vld [vmem:[%s2 + $0x18] sm:$0xff]
    %v78 = vld [vmem:[%s5] sm:$0x1]
    %v80 = vperm.slane %v78, 0
    %82 = vmatpush.msra.mxu0 0.0
    %83 = vmatpush.msra.mxu0 0.0
    %84 = vmatpush.msra.mxu0 0.0
    %85 = vmatpush.msra.mxu0 0.0
    %86 = vmatpush.msra.mxu0 0.0
    %87 = vmatpush.msra.mxu0 0.0
    %88 = vmatpush.msra.mxu0 0.0
    %89 = vmatpush.msra.mxu0 0.0
    %90 = vmatpush.msra.mxu0 0.0
    %91 = vmatpush.msra.mxu0 0.0
    %92 = vmatpush.msra.mxu0 0.0
    %93 = vmatpush.msra.mxu0 0.0
    %94 = vmatpush.msra.mxu0 %v77
    %95 = vmatpush.msra.mxu0 %v76
    %96 = vmatpush.msra.mxu0 %v75
    %97 = vmatpush.msra.mxu0 %v74
    %98 = vmatmul.f32.gmra.mxu0 %v52
    %v99 = vpop.f32.mrf.mxu0
    %v100 = vadd.f32 %v80, %v99
    %101 = vdwg.mxu0
    %v102 = vld [vmem:[%s3] sm:$0xff]
    %v103 = vld [vmem:[%s3 + $0x8] sm:$0xff]
    %v104 = vld [vmem:[%s3 + $0x10] sm:$0xff]
    %v105 = vld [vmem:[%s3 + $0x18] sm:$0xff]
    %v106 = vld [vmem:[%s6] sm:$0x1]
    %v108 = vperm.slane %v106, 0
    %110 = vmatpush.msra.mxu0 0.0
    %111 = vmatpush.msra.mxu0 0.0
    %112 = vmatpush.msra.mxu0 0.0
    %113 = vmatpush.msra.mxu0 0.0
    %114 = vmatpush.msra.mxu0 0.0
    %115 = vmatpush.msra.mxu0 0.0
    %116 = vmatpush.msra.mxu0 0.0
    %117 = vmatpush.msra.mxu0 0.0
    %118 = vmatpush.msra.mxu0 0.0
    %119 = vmatpush.msra.mxu0 0.0
    %120 = vmatpush.msra.mxu0 0.0
    %121 = vmatpush.msra.mxu0 0.0
    %122 = vmatpush.msra.mxu0 %v105
    %123 = vmatpush.msra.mxu0 %v104
    %124 = vmatpush.msra.mxu0 %v103
    %125 = vmatpush.msra.mxu0 %v102
    %126 = vmatmul.f32.gmra.mxu0 %v52
    %v127 = vpop.f32.mrf.mxu0
    %v128 = vadd.f32 %v108, %v127
    %129 = vdwg.mxu0
    %v130 = vxor.u32 %v72, 2147483648
    %v131 = vmul.f32 %v130, 1.442695
    %v132 = vpow.pop %v131
    %v133 = vadd.f32 %v132, 1.0
    %v134 = vrcp.pop %v133
    %v135 = vmul.f32 %v133, %v134
    %v136 = vsub.f32 1.0, %v135
    %v137 = vmul.f32 %v134, %v136
    %v138 = vadd.f32 %v134, %v137
    %vm139 = vweird.f32 %v133
    %vm140 = vweird.f32 %v134
    %vm141 = vmor %vm139, %vm140
    %v142 = vsel %vm141, %v134, %v138
    %v143 = vand.u32 2147483647, %v133
    %vm144 = vcmp.eq.f32.partialorder %v143, 8.507059e+37
    %v145 = vand.u32 %v133, 2147483648
    %v146 = vor.u32 1.1754944e-38, %v145
    %v147 = vsel %vm144, %v146, %v142
    %v148 = vmul.f32 1.0, %v147
    %v149 = vtanh.pop %v100
    %v150 = vmul.f32 %v148, %v149
    %v151 = vxor.u32 %v128, 2147483648
    %v152 = vmul.f32 %v151, 1.442695
    %v153 = vpow.pop %v152
    %v154 = vadd.f32 %v153, 1.0
    %v155 = vrcp.pop %v154
    %v156 = vmul.f32 %v154, %v155
    %v157 = vsub.f32 1.0, %v156
    %v158 = vmul.f32 %v155, %v157
    %v159 = vadd.f32 %v155, %v158
    %vm160 = vweird.f32 %v154
    %vm161 = vweird.f32 %v155
    %vm162 = vmor %vm160, %vm161
    %v163 = vsel %vm162, %v155, %v159
    %v164 = vand.u32 2147483647, %v154
    %vm165 = vcmp.eq.f32.partialorder %v164, 8.507059e+37
    %v166 = vand.u32 %v154, 2147483648
    %v167 = vor.u32 1.1754944e-38, %v166
    %v168 = vsel %vm165, %v167, %v163
    %v169 = vmul.f32 1.0, %v168
    %v170 = vtanh.pop %v150
    %v171 = vmul.f32 %v169, %v170
    %v172 = vmax.f32 %v171, 0.0
    %v173 = vld [vmem:[%s7] sm:$0xff]
    %v174 = vld [vmem:[%s7 + $0x8] sm:$0xff]
    %v175 = vld [vmem:[%s7 + $0x10] sm:$0xff]
    %v176 = vld [vmem:[%s7 + $0x18] sm:$0xff]
    %v177 = vld [vmem:[%s8] sm:$0x1]
    %v179 = vperm.slane %v177, 0
    %v182 = vsel %vm50, %v172, 0
    %184 = vmatpush.msra.mxu0 0.0
    %185 = vmatpush.msra.mxu0 0.0
    %186 = vmatpush.msra.mxu0 0.0
    %187 = vmatpush.msra.mxu0 0.0
    %188 = vmatpush.msra.mxu0 0.0
    %189 = vmatpush.msra.mxu0 0.0
    %190 = vmatpush.msra.mxu0 0.0
    %191 = vmatpush.msra.mxu0 0.0
    %192 = vmatpush.msra.mxu0 0.0
    %193 = vmatpush.msra.mxu0 0.0
    %194 = vmatpush.msra.mxu0 0.0
    %195 = vmatpush.msra.mxu0 0.0
    %196 = vmatpush.msra.mxu0 %v176
    %197 = vmatpush.msra.mxu0 %v175
    %198 = vmatpush.msra.mxu0 %v174
    %199 = vmatpush.msra.mxu0 %v173
    %200 = vmatmul.f32.gmra.mxu0 %v182
    %v201 = vpop.f32.mrf.mxu0
    %v202 = vadd.f32 %v179, %v201
    %203 = vdwg.mxu0
    %v204 = vadd.f32 %v39, %v202
    %v205 = vsel %vm50, %v204, 0.0
    %206 = vadd.xlane.f32.xlu0 %v205
    %v207 = vpop.xlane.xlu0 %206
    %v208 = vrcp.pop 32.0
    %v209 = vmul.f32 32.0, %v208
    %v210 = vsub.f32 1.0, %v209
    %v211 = vmul.f32 %v208, %v210
    %v212 = vadd.f32 %v208, %v211
    %vm213 = vweird.f32 %v208
    %v214 = vsel %vm213, %v208, %v212
    %v215 = vmul.f32 %v207, %v214
    %v216 = vsub.f32 %v204, %v215
    %v217 = vmul.f32 %v216, %v216
    %v218 = vsel %vm50, %v217, 0.0
    %219 = vadd.xlane.f32.xlu0 %v218
    %v220 = vpop.xlane.xlu0 %219
    %v221 = vmul.f32 %v220, %v214
    %v222 = vadd.f32 %v221, 1e-05
    %v223 = vrsqrt.pop %v222
    %v224 = vmul.f32 %v223, %v222
    %v225 = vmul.f32 %v224, %v223
    %v226 = vmul.f32 0.5, %v225
    %v227 = vsub.f32 1.5, %v226
    %v228 = vmul.f32 %v223, %v227
    %vm229 = vweird.f32 %v222
    %vm230 = vweird.f32 %v223
    %vm231 = vmor %vm229, %vm230
    %v232 = vsel %vm231, %v223, %v228
    %v233 = vmul.f32 %v216, %v232
    %v235 = vperm.slane %v40, 0
    %v237 = vmul.f32 %v233, %v235
    %v239 = vperm.slane %v41, 0
    %v241 = vadd.f32 %v237, %v239
    %242 = vst.msk [vmem:[#allocation2] sm:$0xff] %vm50, %v241
    // Predicated region
    $region46: #{positionwise_lstm_ff.1} parent=1 // pred_check
      _
    $region47: #{positionwise_lstm_ff.1} parent=1 // pred_check_branch
      %244 = sbr.rel (0) target = $region49
    $region48: #{positionwise_lstm_ff.1} parent=1 // pred_region
      %246 = vsyncadd [#allocation3], 0
      %s248 = sshll.u32 [#allocation2], 4
      %s249 = int_to_ptr.vmem [resolvable:$true] %s248
      %s250 = sshll.u32 %s11, 4
      %s251 = int_to_ptr.hbm [resolvable:$true] %s250
      %253 = dma.vmem_to_hbm [thread:$0]  %s249, 128, %s251, [#allocation3]
    $region49: #{positionwise_lstm_ff.1} parent=1 // pred_fallthru
      _
    // Predicated region
    $region50: #{positionwise_lstm_ff.1} parent=1 // pred_check
      _
    $region51: #{positionwise_lstm_ff.1} parent=1 // pred_check_branch
      %255 = sbr.rel (0) target = $region53
    $region52: #{positionwise_lstm_ff.1} parent=1 // pred_region
      %257 = dma.done [#allocation3], 128
    $region53: #{positionwise_lstm_ff.1} parent=1 // pred_fallthru
      _
    %258 = vsyncpa [#allocation3], 1

</llo_original>
